<compile_context>
chip_gen: v7x
topology: tpu7x:2x2x1
jax: 0.10.0
libtpu: 0.0.40
codegen_flags: <defaults>
</compile_context>

<pallas_src>
import functools

import jax
import jax.numpy as jnp
from jax.experimental import pallas as pl
from jax.experimental.pallas import tpu as pltpu

# ---------------- model hyper-parameters (mirror the nn.Module) -------------
VOCAB_SIZE = 50
EMBED_DIM = 100
NUM_FILTERS = 100
KSIZES = (3, 4, 5)
K_MAX = max(KSIZES)
NUM_CLASSES = 4
BATCH = 2
SEQ_LEN = 16

# ---------------- lane-dense padded sizes -----------------------------------
V_PAD = 128                       # one-hot block width (vocab + bias lane)
F_PAD = 128                       # per-branch filter padding (100 -> 128)
F_TOT = F_PAD * len(KSIZES)       # 384 fused conv output lanes (3 vregs wide)
C_PAD = 128                       # lane-dense FC output width

# bias lane (V_PAD-1) must never collide with a real token id
assert VOCAB_SIZE <= V_PAD - 1


def textcnn_kernel(tok_ref, lut_ref, mask_ref, wf_ref, bf_ref, out_ref, *,
                   batch_blk, seq_len):
    """Whole forward for one batch block; all operands resident in VMEM."""
    bl = batch_blk * seq_len

    # ---- fused LHS: K_MAX tap-shifted one-hots + constant bias lane ---------
    tok = tok_ref[...]                                          # (BL, 1) int32
    lane = jax.lax.broadcasted_iota(jnp.int32, (bl, V_PAD), 1)
    # one-hot over the vocab plus an always-on lane (V_PAD-1) that picks up
    # the conv-bias row folded into LUT tap-block 0.
    base = jnp.logical_or(lane == tok, lane == V_PAD - 1).astype(jnp.float32)
    parts = [base.astype(jnp.bfloat16)]
    for j in range(1, K_MAX):                                   # static unroll
        # block j at row p one-hot-encodes token[(p + j) % BL]; wrapped /
        # cross-sequence rows only ever contribute to positions masked below.
        parts.append(
            pltpu.roll(base, shift=bl - j, axis=0).astype(jnp.bfloat16))
    lhs = jnp.concatenate(parts, axis=1)                        # (BL, 640) bf16

    # ---- embedding + all three convs + conv bias: one MXU matmul ------------
    y = jnp.dot(lhs, lut_ref[...],
                preferred_element_type=jnp.float32)             # (BL, 384) f32

    # ---- ReLU, validity mask (exact post-ReLU), max-pool over time ----------
    act = jnp.maximum(y, 0.0).reshape(batch_blk, seq_len, F_TOT)
    act = act * mask_ref[...]                                   # (L,384) 0/1
    pooled = jnp.max(act, axis=1)                               # (B_blk, 384)

    # ---- dropout (identity at eval) + lane-dense FC head --------------------
    out_ref[...] = (jnp.dot(pooled, wf_ref[...],
                            preferred_element_type=jnp.float32)
                    + bf_ref[...])


def textcnn_forward(tokens, fused, *, batch_block=None):
    """tokens: (B, L) int32 ids.  Returns logits (B, NUM_CLASSES) float32."""
    b, l = tokens.shape
    assert l >= K_MAX, "roll-wraparound masking needs seq_len >= max kernel"
    assert l == fused["mask"].shape[0], "mask was folded for a different L"
    if batch_block is None:
        batch_block = b if b <= 8 else 8
    assert b % batch_block == 0
    grid = (b // batch_block,)
    tok_flat = tokens.reshape(b * l, 1).astype(jnp.int32)
    kernel = functools.partial(textcnn_kernel,
                               batch_blk=batch_block, seq_len=l)
    out = pl.pallas_call(
        kernel,
        out_shape=jax.ShapeDtypeStruct((b, C_PAD), jnp.float32),
        grid=grid,
        in_specs=[
            pl.BlockSpec((batch_block * l, 1), lambda i: (i, 0)),
            # constant block index => parameters DMA'd once, VMEM-resident
            pl.BlockSpec(fused["lut"].shape, lambda i: (0, 0)),
            pl.BlockSpec(fused["mask"].shape, lambda i: (0, 0)),
            pl.BlockSpec(fused["wf"].shape, lambda i: (0, 0)),
            pl.BlockSpec(fused["bf"].shape, lambda i: (0, 0)),
        ],
        out_specs=pl.BlockSpec((batch_block, C_PAD), lambda i: (i, 0)),
        compiler_params=pltpu.CompilerParams(
            dimension_semantics=("parallel",)),   # shards over 2 TCs on v7x
    )(tok_flat, fused["lut"], fused["mask"], fused["wf"], fused["bf"])
    return out[:, :NUM_CLASSES]


# ---------------- parameters (PyTorch-shaped) + inference-time folding ------
def init_params(key):
    ks = jax.random.split(key, 9)
    emb = jax.random.normal(ks[0], (VOCAB_SIZE, EMBED_DIM), jnp.float32) * 0.1
    emb = emb.at[0].set(0.0)                                   # padding_idx=0
    params = {"embedding": emb}
    for i, k in enumerate(KSIZES):
        # stored as (k, E, F) == torch Conv1d weight (F, E, k) transposed
        params[f"w{i}"] = jax.random.normal(
            ks[1 + 2 * i], (k, EMBED_DIM, NUM_FILTERS), jnp.float32) * 0.05
        params[f"b{i}"] = jax.random.normal(
            ks[2 + 2 * i], (NUM_FILTERS,), jnp.float32) * 0.05
    # FC stored as (300, C) == torch Linear weight (C, 300) transposed
    params["wf"] = jax.random.normal(
        ks[7], (len(KSIZES) * NUM_FILTERS, NUM_CLASSES), jnp.float32) * 0.05
    params["bf"] = jax.random.normal(ks[8], (NUM_CLASSES,), jnp.float32) * 0.05
    return params


def prepare_fused_params(params, seq_len):
    """One-time host-side folding (valid because weights are frozen)."""
    f32 = jnp.float32
    emb_pad = jnp.zeros((V_PAD, EMBED_DIM), f32
                        ).at[:VOCAB_SIZE].set(params["embedding"])
    # LUT row (j*V_PAD + v) = emb[v] @ w_branch[j] in that branch's column
    # block; row V_PAD-1 of tap-block 0 carries the conv biases (bias lane).
    lut = jnp.zeros((K_MAX * V_PAD, F_TOT), f32)
    mask = jnp.zeros((seq_len, F_TOT), f32)
    wf = jnp.zeros((F_TOT, C_PAD), f32)
    bf = jnp.zeros((1, C_PAD), f32).at[0, :NUM_CLASSES].set(params["bf"])
    for bi, k in enumerate(KSIZES):
        c0 = bi * F_PAD
        for j in range(k):
            lut = lut.at[j * V_PAD:(j + 1) * V_PAD, c0:c0 + NUM_FILTERS].set(
                emb_pad @ params[f"w{bi}"][j])
        lut = lut.at[V_PAD - 1, c0:c0 + NUM_FILTERS].set(params[f"b{bi}"])
        mask = mask.at[:seq_len - k + 1, c0:c0 + F_PAD].set(1.0)
        wf = wf.at[c0:c0 + NUM_FILTERS, :NUM_CLASSES].set(
            params["wf"][bi * NUM_FILTERS:(bi + 1) * NUM_FILTERS, :])
    return {"lut": lut.astype(jnp.bfloat16), "mask": mask, "wf": wf, "bf": bf}


# ---------------- pure-JAX reference (mirrors the PyTorch forward) ----------
def reference_forward(tokens, params):
    emb = jnp.take(params["embedding"], tokens, axis=0)       # (B, L, E)
    b, l, _ = emb.shape
    feats = []
    for bi, k in enumerate(KSIZES):
        lo = l - k + 1
        acc = jnp.zeros((b, lo, NUM_FILTERS), jnp.float32)
        for j in range(k):
            acc = acc + jnp.einsum("ble,ef->blf", emb[:, j:j + lo, :],
                                   params[f"w{bi}"][j])
        acc = jax.nn.relu(acc + params[f"b{bi}"][None, None, :])
        feats.append(jnp.max(acc, axis=1))                    # (B, 100)
    feat = jnp.concatenate(feats, axis=1)                     # (B, 300)
    return feat @ params["wf"] + params["bf"][None, :]


if __name__ == "__main__":
    key = jax.random.PRNGKey(0)
    pkey, tkey = jax.random.split(key)
    params = init_params(pkey)
    fused = prepare_fused_params(params, SEQ_LEN)
    tokens = jax.random.randint(tkey, (BATCH, SEQ_LEN), 0, VOCAB_SIZE,
                                dtype=jnp.int32)

    logits = jax.block_until_ready(textcnn_forward(tokens, fused))
    ref = jax.block_until_ready(reference_forward(tokens, params))

    assert logits.shape == (BATCH, NUM_CLASSES)
    # bf16 LUT on the MXU path -> tolerance loosened vs. the pure-f32 reference.
    assert jnp.allclose(logits, ref, atol=2e-2, rtol=2e-2), (logits, ref)
    print("KERNEL_OK")
</pallas_src>

<mosaic_0001>
module attributes {stable_mosaic.version = 11 : i64} {
  func.func @textcnn_kernel(%arg0: i32, %arg1: memref<32x1xi32, #tpu.memory_space<vmem>>, %arg2: memref<640x384xbf16, #tpu.memory_space<vmem>>, %arg3: memref<16x384xf32, #tpu.memory_space<vmem>>, %arg4: memref<384x128xf32, #tpu.memory_space<vmem>>, %arg5: memref<1x128xf32, #tpu.memory_space<vmem>>, %arg6: memref<2x128xf32, #tpu.memory_space<vmem>>) attributes {dimension_semantics = [#tpu.dimension_semantics<parallel>], iteration_bounds = array<i64: 1>, scalar_prefetch = 0 : i64, scratch_operands = 0 : i64, tpu.core_type = #tpu.core_type<tc>, window_params = [{transform_indices = @transform_0, window_bounds = array<i64: 32, 1>}, {pipeline_mode = #tpu.pipeline_mode<synchronous>, transform_indices = @transform_1, window_bounds = array<i64: 640, 384>}, {pipeline_mode = #tpu.pipeline_mode<synchronous>, transform_indices = @transform_2, window_bounds = array<i64: 16, 384>}, {pipeline_mode = #tpu.pipeline_mode<synchronous>, transform_indices = @transform_3, window_bounds = array<i64: 384, 128>}, {pipeline_mode = #tpu.pipeline_mode<synchronous>, transform_indices = @transform_4, window_bounds = array<i64: 1, 128>}, {transform_indices = @transform_5, window_bounds = array<i64: 2, 128>}]} {
    %c0 = arith.constant 0 : index
    %c0_0 = arith.constant 0 : index
    %0 = vector.load %arg1[%c0, %c0_0] : memref<32x1xi32, #tpu.memory_space<vmem>>, vector<32x1xi32>
    %1 = tpu.iota {dimensions = array<i32: 1>} : vector<32x128xi32>
    %2 = vector.broadcast %0 : vector<32x1xi32> to vector<32x128xi32>
    %3 = arith.cmpi eq, %1, %2 : vector<32x128xi32>
    %c127_i32 = arith.constant 127 : i32
    %4 = vector.broadcast %c127_i32 : i32 to vector<32x128xi32>
    %5 = arith.cmpi eq, %1, %4 : vector<32x128xi32>
    %6 = arith.ori %3, %5 : vector<32x128xi1>
    %7 = arith.extui %6 : vector<32x128xi1> to vector<32x128xi32>
    %8 = arith.sitofp %7 : vector<32x128xi32> to vector<32x128xf32>
    %9 = arith.truncf %8 : vector<32x128xf32> to vector<32x128xbf16>
    %c31_i32 = arith.constant 31 : i32
    %10 = tpu.dynamic_rotate %8 by %c31_i32 dim 0 : vector<32x128xf32>, i32 -> vector<32x128xf32>
    %11 = arith.truncf %10 : vector<32x128xf32> to vector<32x128xbf16>
    %c30_i32 = arith.constant 30 : i32
    %12 = tpu.dynamic_rotate %8 by %c30_i32 dim 0 : vector<32x128xf32>, i32 -> vector<32x128xf32>
    %13 = arith.truncf %12 : vector<32x128xf32> to vector<32x128xbf16>
    %c29_i32 = arith.constant 29 : i32
    %14 = tpu.dynamic_rotate %8 by %c29_i32 dim 0 : vector<32x128xf32>, i32 -> vector<32x128xf32>
    %15 = arith.truncf %14 : vector<32x128xf32> to vector<32x128xbf16>
    %c28_i32 = arith.constant 28 : i32
    %16 = tpu.dynamic_rotate %8 by %c28_i32 dim 0 : vector<32x128xf32>, i32 -> vector<32x128xf32>
    %17 = arith.truncf %16 : vector<32x128xf32> to vector<32x128xbf16>
    %18 = tpu.concatenate %9, %11, %13, %15, %17 in 1 : vector<32x128xbf16>, vector<32x128xbf16>, vector<32x128xbf16>, vector<32x128xbf16>, vector<32x128xbf16> -> vector<32x640xbf16>
    %c0_1 = arith.constant 0 : index
    %c0_2 = arith.constant 0 : index
    %19 = vector.load %arg2[%c0_1, %c0_2] : memref<640x384xbf16, #tpu.memory_space<vmem>>, vector<640x384xbf16>
    %cst = arith.constant dense<0.000000e+00> : vector<32x384xf32>
    %20 = tpu.matmul %18, %19, %cst {dimension_numbers = #tpu.dot_dimension_numbers<[1], [0], [0], [1], [0, 0, 1, 1], [], []>} : vector<32x640xbf16>, vector<640x384xbf16>, vector<32x384xf32> -> vector<32x384xf32>
    %cst_3 = arith.constant 0.000000e+00 : f32
    %21 = vector.broadcast %cst_3 : f32 to vector<32x384xf32>
    %22 = arith.maximumf %20, %21 : vector<32x384xf32>
    %23 = vector.shape_cast %22 : vector<32x384xf32> to vector<2x16x384xf32>
    %c0_4 = arith.constant 0 : index
    %c0_5 = arith.constant 0 : index
    %24 = vector.load %arg3[%c0_4, %c0_5] : memref<16x384xf32, #tpu.memory_space<vmem>>, vector<16x384xf32>
    %25 = vector.shape_cast %24 : vector<16x384xf32> to vector<1x16x384xf32>
    %26 = vector.broadcast %25 : vector<1x16x384xf32> to vector<2x16x384xf32>
    %27 = arith.mulf %23, %26 : vector<2x16x384xf32>
    %cst_6 = arith.constant dense<0xFF800000> : vector<2x384xf32>
    %28 = vector.multi_reduction <maximumf>, %27, %cst_6 [1] : vector<2x16x384xf32> to vector<2x384xf32>
    %c0_7 = arith.constant 0 : index
    %c0_8 = arith.constant 0 : index
    %29 = vector.load %arg4[%c0_7, %c0_8] : memref<384x128xf32, #tpu.memory_space<vmem>>, vector<384x128xf32>
    %cst_9 = arith.constant dense<0.000000e+00> : vector<2x128xf32>
    %30 = tpu.matmul %28, %29, %cst_9 {dimension_numbers = #tpu.dot_dimension_numbers<[1], [0], [0], [1], [0, 0, 1, 1], [], []>} : vector<2x384xf32>, vector<384x128xf32>, vector<2x128xf32> -> vector<2x128xf32>
    %c0_10 = arith.constant 0 : index
    %c0_11 = arith.constant 0 : index
    %31 = vector.load %arg5[%c0_10, %c0_11] : memref<1x128xf32, #tpu.memory_space<vmem>>, vector<1x128xf32>
    %32 = vector.broadcast %31 : vector<1x128xf32> to vector<2x128xf32>
    %33 = arith.addf %30, %32 : vector<2x128xf32>
    %c0_12 = arith.constant 0 : index
    %c0_13 = arith.constant 0 : index
    %34 = vector.load %arg6[%c0_12, %c0_13] : memref<2x128xf32, #tpu.memory_space<vmem>>, vector<2x128xf32>
    tpu.vector_store %arg6[%c0_12, %c0_13], %33 {strides = array<i32>} : memref<2x128xf32, #tpu.memory_space<vmem>>, vector<2x128xf32>,
    return
  }
  func.func @transform_0(%arg0: i32) -> (i32, i32) {
    %c0_i32 = arith.constant 0 : i32
    %c0_i32_0 = arith.constant 0 : i32
    return %arg0, %c0_i32 : i32, i32
  }
  func.func @transform_1(%arg0: i32) -> (i32, i32) {
    %c0_i32 = arith.constant 0 : i32
    %c0_i32_0 = arith.constant 0 : i32
    %c0_i32_1 = arith.constant 0 : i32
    return %c0_i32, %c0_i32_0 : i32, i32
  }
  func.func @transform_2(%arg0: i32) -> (i32, i32) {
    %c0_i32 = arith.constant 0 : i32
    %c0_i32_0 = arith.constant 0 : i32
    %c0_i32_1 = arith.constant 0 : i32
    return %c0_i32, %c0_i32_0 : i32, i32
  }
  func.func @transform_3(%arg0: i32) -> (i32, i32) {
    %c0_i32 = arith.constant 0 : i32
    %c0_i32_0 = arith.constant 0 : i32
    %c0_i32_1 = arith.constant 0 : i32
    return %c0_i32, %c0_i32_0 : i32, i32
  }
  func.func @transform_4(%arg0: i32) -> (i32, i32) {
    %c0_i32 = arith.constant 0 : i32
    %c0_i32_0 = arith.constant 0 : i32
    %c0_i32_1 = arith.constant 0 : i32
    return %c0_i32, %c0_i32_0 : i32, i32
  }
  func.func @transform_5(%arg0: i32) -> (i32, i32) {
    %c0_i32 = arith.constant 0 : i32
    %c0_i32_0 = arith.constant 0 : i32
    return %arg0, %c0_i32 : i32, i32
  }
}

</mosaic_0001>

<llo_original>
// kernel: tpu_custom_call.1
$region0: #{tpu_custom_call.1}
  #allocation0 [shape = 'u32[]', space=smem, size = 0x4, offset = 0x4, fixed_abs, tag = 'smem constant byte address 0x4 - core index']
  #allocation1 [shape = 'u32[144,128]{1,0:T(1,128)}', space=vmem, size = 0x12000, scoped, tag = 'internal scratch']
  %s0 = inlined_call_operand.vmem [shape: s32[32,1], index: 0, kind: input, shape index: {}]
  %s1 = inlined_call_operand.hbm [shape: bf16[640,384], index: 1, kind: input, shape index: {}]
  %s2 = inlined_call_operand.hbm [shape: f32[16,384], index: 2, kind: input, shape index: {}]
  %s3 = inlined_call_operand.hbm [shape: f32[384,128], index: 3, kind: input, shape index: {}]
  %s4 = inlined_call_operand.vmem [shape: f32[1,128], index: 4, kind: input, shape index: {}]
  %s5 = inlined_call_operand.hbm [shape: f32[2,128], index: 5, kind: output, shape index: {}]
  %s6 = sld [smem:[#allocation0]]
  $region42: #{tpu_custom_call.1} parent=0
    _
  %s8 = ssub.s32 1, %s6
  %s9 = scalar_select 0, %s8, %s6
  $region1: #{tpu_custom_call.1} parent=0
    #allocation2 [shape = 'u8[491520]{0}', space=vmem, size = 0x78000, scoped, tag = 'input window, operand 1, single buffered']
    #allocation3 [shape = 's32[1]{0}', space=sflag, size = 0x4, scoped, tag = 'scoped memory for tpu_custom_call.1']
    #allocation4 [shape = 's32[1]{0}', space=sflag, size = 0x4, scoped, tag = 'scoped memory for tpu_custom_call.1']
    #allocation5 [shape = 'u8[24576]{0}', space=vmem, size = 0x6000, scoped, tag = 'input window, operand 2, single buffered']
    #allocation6 [shape = 's32[1]{0}', space=sflag, size = 0x4, scoped, tag = 'scoped memory for tpu_custom_call.1']
    #allocation7 [shape = 'u8[196608]{0}', space=vmem, size = 0x30000, scoped, tag = 'input window, operand 3, single buffered']
    #allocation8 [shape = 'u8[1024]{0}', space=vmem, size = 0x400, scoped, tag = 'output window, operand 0, single buffered']
    %10 = vsyncpa [#allocation3], 0
    %11 = vsyncpa [#allocation6], 0
    %12 = vsyncpa [#allocation4], 0
    // Predicated region
    $region2: #{tpu_custom_call.1} parent=1 // pred_check
      _
    $region3: #{tpu_custom_call.1} parent=1 // pred_check_branch
      %14 = sbr.rel (0) target = $region5
    $region4: #{tpu_custom_call.1} parent=1 // pred_region
      _
    $region5: #{tpu_custom_call.1} parent=1 // pred_fallthru
      _
    // Predicated region
    $region6: #{tpu_custom_call.1} parent=1 // pred_check
      _
    $region7: #{tpu_custom_call.1} parent=1 // pred_check_branch
      %16 = sbr.rel (0) target = $region9
    $region8: #{tpu_custom_call.1} parent=1 // pred_region
      %s18 = ssub.s32 15360, 15360
      %19 = vsyncadd [#allocation3], %s18
      %s20 = sshll.u32 [#allocation2], 4
      %s21 = int_to_ptr.vmem [resolvable:$true] %s20
      %26 = dma.hbm_to_vmem [thread:$0]  %s1, 15360, %s21, [#allocation3], 192, 192, 12
    $region9: #{tpu_custom_call.1} parent=1 // pred_fallthru
      _
    // Predicated region
    $region10: #{tpu_custom_call.1} parent=1 // pred_check
      _
    $region11: #{tpu_custom_call.1} parent=1 // pred_check_branch
      %28 = sbr.rel (0) target = $region13
    $region12: #{tpu_custom_call.1} parent=1 // pred_region
      %s30 = ssub.s32 768, 768
      %31 = vsyncadd [#allocation6], %s30
      %s32 = sshll.u32 [#allocation5], 4
      %s33 = int_to_ptr.vmem [resolvable:$true] %s32
      %38 = dma.hbm_to_vmem [thread:$0]  %s2, 768, %s33, [#allocation6], 384, 384, 24
    $region13: #{tpu_custom_call.1} parent=1 // pred_fallthru
      _
    // Predicated region
    $region14: #{tpu_custom_call.1} parent=1 // pred_check
      _
    $region15: #{tpu_custom_call.1} parent=1 // pred_check_branch
      %40 = sbr.rel (0) target = $region17
    $region16: #{tpu_custom_call.1} parent=1 // pred_region
      %s42 = ssub.s32 6144, 6144
      %43 = vsyncadd [#allocation6], %s42
      %s44 = sshll.u32 [#allocation7], 4
      %s45 = int_to_ptr.vmem [resolvable:$true] %s44
      %50 = dma.hbm_to_vmem [thread:$0]  %s3, 6144, %s45, [#allocation6], 128, 128, 8
    $region17: #{tpu_custom_call.1} parent=1 // pred_fallthru
      _
    // Predicated region
    $region18: #{tpu_custom_call.1} parent=1 // pred_check
      _
    $region19: #{tpu_custom_call.1} parent=1 // pred_check_branch
      %52 = sbr.rel (0) target = $region21
    $region20: #{tpu_custom_call.1} parent=1 // pred_region
      _
    $region21: #{tpu_custom_call.1} parent=1 // pred_fallthru
      _
    // Predicated region
    $region22: #{tpu_custom_call.1} parent=1 // pred_check
      _
    $region23: #{tpu_custom_call.1} parent=1 // pred_check_branch
      %54 = sbr.rel (0) target = $region25
    $region24: #{tpu_custom_call.1} parent=1 // pred_region
      %55 = dma.done [#allocation3], 15360
    $region25: #{tpu_custom_call.1} parent=1 // pred_fallthru
      _
    // Predicated region
    $region26: #{tpu_custom_call.1} parent=1 // pred_check
      _
    $region27: #{tpu_custom_call.1} parent=1 // pred_check_branch
      %57 = sbr.rel (0) target = $region29
    $region28: #{tpu_custom_call.1} parent=1 // pred_region
      %58 = dma.done [#allocation6], 768
    $region29: #{tpu_custom_call.1} parent=1 // pred_fallthru
      _
    // Predicated region
    $region30: #{tpu_custom_call.1} parent=1 // pred_check
      _
    $region31: #{tpu_custom_call.1} parent=1 // pred_check_branch
      %60 = sbr.rel (0) target = $region33
    $region32: #{tpu_custom_call.1} parent=1 // pred_region
      %61 = dma.done [#allocation6], 6144
    $region33: #{tpu_custom_call.1} parent=1 // pred_fallthru
      _
    %v63 = vld [vmem:[%s0] sm:$0xff]
    %v64 = vld [vmem:[%s0 + $0x8] sm:$0xff]
    %v65 = vld [vmem:[%s0 + $0x10] sm:$0xff]
    %v66 = vld [vmem:[%s0 + $0x18] sm:$0xff]
    %v67 = vlaneseq
    %v68 = vand.u32 %v67, 127
    %69 = vset.pattern.permute.xlu0 0
    %70 = vperm.xlu0 %69, %v63
    %v71 = vpop.permute.xlu0 %70
    %72 = vset.pattern.permute.xlu0 0
    %73 = vperm.xlu0 %72, %v64
    %v74 = vpop.permute.xlu0 %73
    %75 = vset.pattern.permute.xlu0 0
    %76 = vperm.xlu0 %75, %v65
    %v77 = vpop.permute.xlu0 %76
    %78 = vset.pattern.permute.xlu0 0
    %79 = vperm.xlu0 %78, %v66
    %v80 = vpop.permute.xlu0 %79
    %vm81 = vcmp.eq.s32.totalorder %v68, %v71
    %vm82 = vcmp.eq.s32.totalorder %v68, %v74
    %vm83 = vcmp.eq.s32.totalorder %v68, %v77
    %vm84 = vcmp.eq.s32.totalorder %v68, %v80
    %vm85 = vcmp.eq.s32.totalorder %v68, 127
    %vm86 = vmor %vm81, %vm85
    %vm87 = vmor %vm82, %vm85
    %vm88 = vmor %vm83, %vm85
    %vm89 = vmor %vm84, %vm85
    %v90 = vsel %vm86, 1, 0
    %v91 = vsel %vm87, 1, 0
    %v92 = vsel %vm88, 1, 0
    %v93 = vsel %vm89, 1, 0
    %v94 = vcvt.s32.f32 %v90
    %v95 = vcvt.s32.f32 %v91
    %v96 = vcvt.s32.f32 %v92
    %v97 = vcvt.s32.f32 %v93
    %v98 = vpack.c.bf16 %v95, %v94
    %v99 = vpack.c.bf16 %v97, %v96
    %v100 = vrot.slane %v94, 1
    %v101 = vrot.slane %v95, 1
    %v102 = vrot.slane %v96, 1
    %v103 = vrot.slane %v97, 1
    %v104 = vlaneseq
    %v105 = vshrl.u32 %v104, 7
    %vm106 = vcmp.lt.s32.totalorder %v105, 7
    %v107 = vsel %vm106, %v102, %v103
    %v108 = vsel %vm106, %v101, %v102
    %v109 = vsel %vm106, %v100, %v101
    %v110 = vsel %vm106, %v103, %v100
    %v111 = vpack.c.bf16 %v108, %v109
    %v112 = vpack.c.bf16 %v110, %v107
    %v113 = vrot.slane %v94, 2
    %v114 = vrot.slane %v95, 2
    %v115 = vrot.slane %v96, 2
    %v116 = vrot.slane %v97, 2
    %vm117 = vcmp.lt.s32.totalorder %v105, 6
    %v118 = vsel %vm117, %v115, %v116
    %v119 = vsel %vm117, %v114, %v115
    %v120 = vsel %vm117, %v113, %v114
    %v121 = vsel %vm117, %v116, %v113
    %v122 = vpack.c.bf16 %v119, %v120
    %v123 = vpack.c.bf16 %v121, %v118
    %v124 = vrot.slane %v94, 3
    %v125 = vrot.slane %v95, 3
    %v126 = vrot.slane %v96, 3
    %v127 = vrot.slane %v97, 3
    %vm128 = vcmp.lt.s32.totalorder %v105, 5
    %v129 = vsel %vm128, %v126, %v127
    %v130 = vsel %vm128, %v125, %v126
    %v131 = vsel %vm128, %v124, %v125
    %v132 = vsel %vm128, %v127, %v124
    %v133 = vpack.c.bf16 %v130, %v131
    %v134 = vpack.c.bf16 %v132, %v129
    %v135 = vrot.slane %v94, 4
    %v136 = vrot.slane %v95, 4
    %v137 = vrot.slane %v96, 4
    %v138 = vrot.slane %v97, 4
    %vm139 = vcmp.lt.s32.totalorder %v105, 4
    %v140 = vsel %vm139, %v137, %v138
    %v141 = vsel %vm139, %v136, %v137
    %v142 = vsel %vm139, %v135, %v136
    %v143 = vsel %vm139, %v138, %v135
    %v144 = vpack.c.bf16 %v141, %v142
    %v145 = vpack.c.bf16 %v143, %v140
    %v146 = vld [vmem:[#allocation2] sm:$0xff]
    %v147 = vld [vmem:[#allocation2 + $0x8] sm:$0xf]
    %v148 = vld [vmem:[#allocation2 + $0xc] sm:$0xff]
    %v149 = vld [vmem:[#allocation2 + $0x14] sm:$0xf]
    %v150 = vld [vmem:[#allocation2 + $0x18] sm:$0xff]
    %v151 = vld [vmem:[#allocation2 + $0x20] sm:$0xf]
    %v152 = vld [vmem:[#allocation2 + $0x24] sm:$0xff]
    %v153 = vld [vmem:[#allocation2 + $0x2c] sm:$0xf]
    %v154 = vld [vmem:[#allocation2 + $0x30] sm:$0xff]
    %v155 = vld [vmem:[#allocation2 + $0x38] sm:$0xf]
    %v156 = vld [vmem:[#allocation2 + $0x3c] sm:$0xff]
    %v157 = vld [vmem:[#allocation2 + $0x44] sm:$0xf]
    %v158 = vld [vmem:[#allocation2 + $0x48] sm:$0xff]
    %v159 = vld [vmem:[#allocation2 + $0x50] sm:$0xf]
    %v160 = vld [vmem:[#allocation2 + $0x54] sm:$0xff]
    %v161 = vld [vmem:[#allocation2 + $0x5c] sm:$0xf]
    %v162 = vld [vmem:[#allocation2 + $0x60] sm:$0xff]
    %v163 = vld [vmem:[#allocation2 + $0x68] sm:$0xf]
    %v164 = vld [vmem:[#allocation2 + $0x6c] sm:$0xff]
    %v165 = vld [vmem:[#allocation2 + $0x74] sm:$0xf]
    %v166 = vld [vmem:[#allocation2 + $0x78] sm:$0xff]
    %v167 = vld [vmem:[#allocation2 + $0x80] sm:$0xf]
    %v168 = vld [vmem:[#allocation2 + $0x84] sm:$0xff]
    %v169 = vld [vmem:[#allocation2 + $0x8c] sm:$0xf]
    %v170 = vld [vmem:[#allocation2 + $0x90] sm:$0xff]
    %v171 = vld [vmem:[#allocation2 + $0x98] sm:$0xf]
    %v172 = vld [vmem:[#allocation2 + $0x9c] sm:$0xff]
    %v173 = vld [vmem:[#allocation2 + $0xa4] sm:$0xf]
    %v174 = vld [vmem:[#allocation2 + $0xa8] sm:$0xff]
    %v175 = vld [vmem:[#allocation2 + $0xb0] sm:$0xf]
    %v176 = vld [vmem:[#allocation2 + $0xb4] sm:$0xff]
    %v177 = vld [vmem:[#allocation2 + $0xbc] sm:$0xf]
    %v178 = vld [vmem:[#allocation2 + $0xc0] sm:$0xff]
    %v179 = vld [vmem:[#allocation2 + $0xc8] sm:$0xf]
    %v180 = vld [vmem:[#allocation2 + $0xcc] sm:$0xff]
    %v181 = vld [vmem:[#allocation2 + $0xd4] sm:$0xf]
    %v182 = vld [vmem:[#allocation2 + $0xd8] sm:$0xff]
    %v183 = vld [vmem:[#allocation2 + $0xe0] sm:$0xf]
    %v184 = vld [vmem:[#allocation2 + $0xe4] sm:$0xff]
    %v185 = vld [vmem:[#allocation2 + $0xec] sm:$0xf]
    %v186 = vld [vmem:[#allocation2 + $0xf0] sm:$0xff]
    %v187 = vld [vmem:[#allocation2 + $0xf8] sm:$0xf]
    %v188 = vld [vmem:[#allocation2 + $0xfc] sm:$0xff]
    %v189 = vld [vmem:[#allocation2 + $0x104] sm:$0xf]
    %v190 = vld [vmem:[#allocation2 + $0x108] sm:$0xff]
    %v191 = vld [vmem:[#allocation2 + $0x110] sm:$0xf]
    %v192 = vld [vmem:[#allocation2 + $0x114] sm:$0xff]
    %v193 = vld [vmem:[#allocation2 + $0x11c] sm:$0xf]
    %v194 = vld [vmem:[#allocation2 + $0x120] sm:$0xff]
    %v195 = vld [vmem:[#allocation2 + $0x128] sm:$0xf]
    %v196 = vld [vmem:[#allocation2 + $0x12c] sm:$0xff]
    %v197 = vld [vmem:[#allocation2 + $0x134] sm:$0xf]
    %v198 = vld [vmem:[#allocation2 + $0x138] sm:$0xff]
    %v199 = vld [vmem:[#allocation2 + $0x140] sm:$0xf]
    %v200 = vld [vmem:[#allocation2 + $0x144] sm:$0xff]
    %v201 = vld [vmem:[#allocation2 + $0x14c] sm:$0xf]
    %v202 = vld [vmem:[#allocation2 + $0x150] sm:$0xff]
    %v203 = vld [vmem:[#allocation2 + $0x158] sm:$0xf]
    %v204 = vld [vmem:[#allocation2 + $0x15c] sm:$0xff]
    %v205 = vld [vmem:[#allocation2 + $0x164] sm:$0xf]
    %v206 = vld [vmem:[#allocation2 + $0x168] sm:$0xff]
    %v207 = vld [vmem:[#allocation2 + $0x170] sm:$0xf]
    %v208 = vld [vmem:[#allocation2 + $0x174] sm:$0xff]
    %v209 = vld [vmem:[#allocation2 + $0x17c] sm:$0xf]
    %v210 = vld [vmem:[#allocation2 + $0x180] sm:$0xff]
    %v211 = vld [vmem:[#allocation2 + $0x188] sm:$0xf]
    %v212 = vld [vmem:[#allocation2 + $0x18c] sm:$0xff]
    %v213 = vld [vmem:[#allocation2 + $0x194] sm:$0xf]
    %v214 = vld [vmem:[#allocation2 + $0x198] sm:$0xff]
    %v215 = vld [vmem:[#allocation2 + $0x1a0] sm:$0xf]
    %v216 = vld [vmem:[#allocation2 + $0x1a4] sm:$0xff]
    %v217 = vld [vmem:[#allocation2 + $0x1ac] sm:$0xf]
    %v218 = vld [vmem:[#allocation2 + $0x1b0] sm:$0xff]
    %v219 = vld [vmem:[#allocation2 + $0x1b8] sm:$0xf]
    %v220 = vld [vmem:[#allocation2 + $0x1bc] sm:$0xff]
    %v221 = vld [vmem:[#allocation2 + $0x1c4] sm:$0xf]
    %v222 = vld [vmem:[#allocation2 + $0x1c8] sm:$0xff]
    %v223 = vld [vmem:[#allocation2 + $0x1d0] sm:$0xf]
    %v224 = vld [vmem:[#allocation2 + $0x1d4] sm:$0xff]
    %v225 = vld [vmem:[#allocation2 + $0x1dc] sm:$0xf]
    %v226 = vld [vmem:[#allocation2 + $0x1e0] sm:$0xff]
    %v227 = vld [vmem:[#allocation2 + $0x1e8] sm:$0xf]
    %v228 = vld [vmem:[#allocation2 + $0x1ec] sm:$0xff]
    %v229 = vld [vmem:[#allocation2 + $0x1f4] sm:$0xf]
    %v230 = vld [vmem:[#allocation2 + $0x1f8] sm:$0xff]
    %v231 = vld [vmem:[#allocation2 + $0x200] sm:$0xf]
    %v232 = vld [vmem:[#allocation2 + $0x204] sm:$0xff]
    %v233 = vld [vmem:[#allocation2 + $0x20c] sm:$0xf]
    %v234 = vld [vmem:[#allocation2 + $0x210] sm:$0xff]
    %v235 = vld [vmem:[#allocation2 + $0x218] sm:$0xf]
    %v236 = vld [vmem:[#allocation2 + $0x21c] sm:$0xff]
    %v237 = vld [vmem:[#allocation2 + $0x224] sm:$0xf]
    %v238 = vld [vmem:[#allocation2 + $0x228] sm:$0xff]
    %v239 = vld [vmem:[#allocation2 + $0x230] sm:$0xf]
    %v240 = vld [vmem:[#allocation2 + $0x234] sm:$0xff]
    %v241 = vld [vmem:[#allocation2 + $0x23c] sm:$0xf]
    %v242 = vld [vmem:[#allocation2 + $0x240] sm:$0xff]
    %v243 = vld [vmem:[#allocation2 + $0x248] sm:$0xf]
    %v244 = vld [vmem:[#allocation2 + $0x24c] sm:$0xff]
    %v245 = vld [vmem:[#allocation2 + $0x254] sm:$0xf]
    %v246 = vld [vmem:[#allocation2 + $0x258] sm:$0xff]
    %v247 = vld [vmem:[#allocation2 + $0x260] sm:$0xf]
    %v248 = vld [vmem:[#allocation2 + $0x264] sm:$0xff]
    %v249 = vld [vmem:[#allocation2 + $0x26c] sm:$0xf]
    %v250 = vld [vmem:[#allocation2 + $0x270] sm:$0xff]
    %v251 = vld [vmem:[#allocation2 + $0x278] sm:$0xf]
    %v252 = vld [vmem:[#allocation2 + $0x27c] sm:$0xff]
    %v253 = vld [vmem:[#allocation2 + $0x284] sm:$0xf]
    %v254 = vld [vmem:[#allocation2 + $0x288] sm:$0xff]
    %v255 = vld [vmem:[#allocation2 + $0x290] sm:$0xf]
    %v256 = vld [vmem:[#allocation2 + $0x294] sm:$0xff]
    %v257 = vld [vmem:[#allocation2 + $0x29c] sm:$0xf]
    %v258 = vld [vmem:[#allocation2 + $0x2a0] sm:$0xff]
    %v259 = vld [vmem:[#allocation2 + $0x2a8] sm:$0xf]
    %v260 = vld [vmem:[#allocation2 + $0x2ac] sm:$0xff]
    %v261 = vld [vmem:[#allocation2 + $0x2b4] sm:$0xf]
    %v262 = vld [vmem:[#allocation2 + $0x2b8] sm:$0xff]
    %v263 = vld [vmem:[#allocation2 + $0x2c0] sm:$0xf]
    %v264 = vld [vmem:[#allocation2 + $0x2c4] sm:$0xff]
    %v265 = vld [vmem:[#allocation2 + $0x2cc] sm:$0xf]
    %v266 = vld [vmem:[#allocation2 + $0x2d0] sm:$0xff]
    %v267 = vld [vmem:[#allocation2 + $0x2d8] sm:$0xf]
    %v268 = vld [vmem:[#allocation2 + $0x2dc] sm:$0xff]
    %v269 = vld [vmem:[#allocation2 + $0x2e4] sm:$0xf]
    %v270 = vld [vmem:[#allocation2 + $0x2e8] sm:$0xff]
    %v271 = vld [vmem:[#allocation2 + $0x2f0] sm:$0xf]
    %v272 = vld [vmem:[#allocation2 + $0x2f4] sm:$0xff]
    %v273 = vld [vmem:[#allocation2 + $0x2fc] sm:$0xf]
    %v274 = vld [vmem:[#allocation2 + $0x300] sm:$0xff]
    %v275 = vld [vmem:[#allocation2 + $0x308] sm:$0xf]
    %v276 = vld [vmem:[#allocation2 + $0x30c] sm:$0xff]
    %v277 = vld [vmem:[#allocation2 + $0x314] sm:$0xf]
    %v278 = vld [vmem:[#allocation2 + $0x318] sm:$0xff]
    %v279 = vld [vmem:[#allocation2 + $0x320] sm:$0xf]
    %v280 = vld [vmem:[#allocation2 + $0x324] sm:$0xff]
    %v281 = vld [vmem:[#allocation2 + $0x32c] sm:$0xf]
    %v282 = vld [vmem:[#allocation2 + $0x330] sm:$0xff]
    %v283 = vld [vmem:[#allocation2 + $0x338] sm:$0xf]
    %v284 = vld [vmem:[#allocation2 + $0x33c] sm:$0xff]
    %v285 = vld [vmem:[#allocation2 + $0x344] sm:$0xf]
    %v286 = vld [vmem:[#allocation2 + $0x348] sm:$0xff]
    %v287 = vld [vmem:[#allocation2 + $0x350] sm:$0xf]
    %v288 = vld [vmem:[#allocation2 + $0x354] sm:$0xff]
    %v289 = vld [vmem:[#allocation2 + $0x35c] sm:$0xf]
    %v290 = vld [vmem:[#allocation2 + $0x360] sm:$0xff]
    %v291 = vld [vmem:[#allocation2 + $0x368] sm:$0xf]
    %v292 = vld [vmem:[#allocation2 + $0x36c] sm:$0xff]
    %v293 = vld [vmem:[#allocation2 + $0x374] sm:$0xf]
    %v294 = vld [vmem:[#allocation2 + $0x378] sm:$0xff]
    %v295 = vld [vmem:[#allocation2 + $0x380] sm:$0xf]
    %v296 = vld [vmem:[#allocation2 + $0x384] sm:$0xff]
    %v297 = vld [vmem:[#allocation2 + $0x38c] sm:$0xf]
    %v298 = vld [vmem:[#allocation2 + $0x390] sm:$0xff]
    %v299 = vld [vmem:[#allocation2 + $0x398] sm:$0xf]
    %v300 = vld [vmem:[#allocation2 + $0x39c] sm:$0xff]
    %v301 = vld [vmem:[#allocation2 + $0x3a4] sm:$0xf]
    %v302 = vld [vmem:[#allocation2 + $0x3a8] sm:$0xff]
    %v303 = vld [vmem:[#allocation2 + $0x3b0] sm:$0xf]
    %v304 = vld [vmem:[#allocation2 + $0x3b4] sm:$0xff]
    %v305 = vld [vmem:[#allocation2 + $0x3bc] sm:$0xf]
    %v466 = vunpack.c.l.b16 %v146
    %v467 = vunpack.c.h.b16 %v146
    %v468 = vunpack.c.l.b16 %v147
    %v469 = vunpack.c.l.b16 %v148
    %v470 = vunpack.c.h.b16 %v148
    %v471 = vunpack.c.l.b16 %v149
    %v472 = vunpack.c.l.b16 %v150
    %v473 = vunpack.c.h.b16 %v150
    %v474 = vunpack.c.l.b16 %v151
    %v475 = vunpack.c.l.b16 %v152
    %v476 = vunpack.c.h.b16 %v152
    %v477 = vunpack.c.l.b16 %v153
    %v478 = vunpack.c.l.b16 %v154
    %v479 = vunpack.c.h.b16 %v154
    %v480 = vunpack.c.l.b16 %v155
    %v481 = vunpack.c.l.b16 %v156
    %v482 = vunpack.c.h.b16 %v156
    %v483 = vunpack.c.l.b16 %v157
    %v484 = vunpack.c.l.b16 %v158
    %v485 = vunpack.c.h.b16 %v158
    %v486 = vunpack.c.l.b16 %v159
    %v487 = vunpack.c.l.b16 %v160
    %v488 = vunpack.c.h.b16 %v160
    %v489 = vunpack.c.l.b16 %v161
    %v490 = vunpack.c.l.b16 %v162
    %v491 = vunpack.c.h.b16 %v162
    %v492 = vunpack.c.l.b16 %v163
    %v493 = vunpack.c.l.b16 %v164
    %v494 = vunpack.c.h.b16 %v164
    %v495 = vunpack.c.l.b16 %v165
    %v496 = vunpack.c.l.b16 %v166
    %v497 = vunpack.c.h.b16 %v166
    %v498 = vunpack.c.l.b16 %v167
    %v499 = vunpack.c.l.b16 %v168
    %v500 = vunpack.c.h.b16 %v168
    %v501 = vunpack.c.l.b16 %v169
    %v502 = vunpack.c.l.b16 %v170
    %v503 = vunpack.c.h.b16 %v170
    %v504 = vunpack.c.l.b16 %v171
    %v505 = vunpack.c.l.b16 %v172
    %v506 = vunpack.c.h.b16 %v172
    %v507 = vunpack.c.l.b16 %v173
    %v508 = vunpack.c.l.b16 %v174
    %v509 = vunpack.c.h.b16 %v174
    %v510 = vunpack.c.l.b16 %v175
    %v511 = vunpack.c.l.b16 %v176
    %v512 = vunpack.c.h.b16 %v176
    %v513 = vunpack.c.l.b16 %v177
    %v514 = vunpack.c.l.b16 %v178
    %v515 = vunpack.c.h.b16 %v178
    %v516 = vunpack.c.l.b16 %v179
    %v517 = vunpack.c.l.b16 %v180
    %v518 = vunpack.c.h.b16 %v180
    %v519 = vunpack.c.l.b16 %v181
    %v520 = vunpack.c.l.b16 %v182
    %v521 = vunpack.c.h.b16 %v182
    %v522 = vunpack.c.l.b16 %v183
    %v523 = vunpack.c.l.b16 %v184
    %v524 = vunpack.c.h.b16 %v184
    %v525 = vunpack.c.l.b16 %v185
    %v526 = vunpack.c.l.b16 %v186
    %v527 = vunpack.c.h.b16 %v186
    %v528 = vunpack.c.l.b16 %v187
    %v529 = vunpack.c.l.b16 %v188
    %v530 = vunpack.c.h.b16 %v188
    %v531 = vunpack.c.l.b16 %v189
    %v532 = vunpack.c.l.b16 %v190
    %v533 = vunpack.c.h.b16 %v190
    %v534 = vunpack.c.l.b16 %v191
    %v535 = vunpack.c.l.b16 %v192
    %v536 = vunpack.c.h.b16 %v192
    %v537 = vunpack.c.l.b16 %v193
    %v538 = vunpack.c.l.b16 %v194
    %v539 = vunpack.c.h.b16 %v194
    %v540 = vunpack.c.l.b16 %v195
    %v541 = vunpack.c.l.b16 %v196
    %v542 = vunpack.c.h.b16 %v196
    %v543 = vunpack.c.l.b16 %v197
    %v544 = vunpack.c.l.b16 %v198
    %v545 = vunpack.c.h.b16 %v198
    %v546 = vunpack.c.l.b16 %v199
    %v547 = vunpack.c.l.b16 %v200
    %v548 = vunpack.c.h.b16 %v200
    %v549 = vunpack.c.l.b16 %v201
    %v550 = vunpack.c.l.b16 %v202
    %v551 = vunpack.c.h.b16 %v202
    %v552 = vunpack.c.l.b16 %v203
    %v553 = vunpack.c.l.b16 %v204
    %v554 = vunpack.c.h.b16 %v204
    %v555 = vunpack.c.l.b16 %v205
    %v556 = vunpack.c.l.b16 %v206
    %v557 = vunpack.c.h.b16 %v206
    %v558 = vunpack.c.l.b16 %v207
    %v559 = vunpack.c.l.b16 %v208
    %v560 = vunpack.c.h.b16 %v208
    %v561 = vunpack.c.l.b16 %v209
    %v562 = vunpack.c.l.b16 %v210
    %v563 = vunpack.c.h.b16 %v210
    %v564 = vunpack.c.l.b16 %v211
    %v565 = vunpack.c.l.b16 %v212
    %v566 = vunpack.c.h.b16 %v212
    %v567 = vunpack.c.l.b16 %v213
    %v568 = vunpack.c.l.b16 %v214
    %v569 = vunpack.c.h.b16 %v214
    %v570 = vunpack.c.l.b16 %v215
    %v571 = vunpack.c.l.b16 %v216
    %v572 = vunpack.c.h.b16 %v216
    %v573 = vunpack.c.l.b16 %v217
    %v574 = vunpack.c.l.b16 %v218
    %v575 = vunpack.c.h.b16 %v218
    %v576 = vunpack.c.l.b16 %v219
    %v577 = vunpack.c.l.b16 %v220
    %v578 = vunpack.c.h.b16 %v220
    %v579 = vunpack.c.l.b16 %v221
    %v580 = vunpack.c.l.b16 %v222
    %v581 = vunpack.c.h.b16 %v222
    %v582 = vunpack.c.l.b16 %v223
    %v583 = vunpack.c.l.b16 %v224
    %v584 = vunpack.c.h.b16 %v224
    %v585 = vunpack.c.l.b16 %v225
    %v586 = vunpack.c.l.b16 %v226
    %v587 = vunpack.c.h.b16 %v226
    %v588 = vunpack.c.l.b16 %v227
    %v589 = vunpack.c.l.b16 %v228
    %v590 = vunpack.c.h.b16 %v228
    %v591 = vunpack.c.l.b16 %v229
    %v592 = vunpack.c.l.b16 %v230
    %v593 = vunpack.c.h.b16 %v230
    %v594 = vunpack.c.l.b16 %v231
    %v595 = vunpack.c.l.b16 %v232
    %v596 = vunpack.c.h.b16 %v232
    %v597 = vunpack.c.l.b16 %v233
    %v598 = vunpack.c.l.b16 %v234
    %v599 = vunpack.c.h.b16 %v234
    %v600 = vunpack.c.l.b16 %v235
    %v601 = vunpack.c.l.b16 %v236
    %v602 = vunpack.c.h.b16 %v236
    %v603 = vunpack.c.l.b16 %v237
    %v604 = vunpack.c.l.b16 %v238
    %v605 = vunpack.c.h.b16 %v238
    %v606 = vunpack.c.l.b16 %v239
    %v607 = vunpack.c.l.b16 %v240
    %v608 = vunpack.c.h.b16 %v240
    %v609 = vunpack.c.l.b16 %v241
    %v610 = vunpack.c.l.b16 %v242
    %v611 = vunpack.c.h.b16 %v242
    %v612 = vunpack.c.l.b16 %v243
    %v613 = vunpack.c.l.b16 %v244
    %v614 = vunpack.c.h.b16 %v244
    %v615 = vunpack.c.l.b16 %v245
    %v616 = vunpack.c.l.b16 %v246
    %v617 = vunpack.c.h.b16 %v246
    %v618 = vunpack.c.l.b16 %v247
    %v619 = vunpack.c.l.b16 %v248
    %v620 = vunpack.c.h.b16 %v248
    %v621 = vunpack.c.l.b16 %v249
    %v622 = vunpack.c.l.b16 %v250
    %v623 = vunpack.c.h.b16 %v250
    %v624 = vunpack.c.l.b16 %v251
    %v625 = vunpack.c.l.b16 %v252
    %v626 = vunpack.c.h.b16 %v252
    %v627 = vunpack.c.l.b16 %v253
    %v628 = vunpack.c.l.b16 %v254
    %v629 = vunpack.c.h.b16 %v254
    %v630 = vunpack.c.l.b16 %v255
    %v631 = vunpack.c.l.b16 %v256
    %v632 = vunpack.c.h.b16 %v256
    %v633 = vunpack.c.l.b16 %v257
    %v634 = vunpack.c.l.b16 %v258
    %v635 = vunpack.c.h.b16 %v258
    %v636 = vunpack.c.l.b16 %v259
    %v637 = vunpack.c.l.b16 %v260
    %v638 = vunpack.c.h.b16 %v260
    %v639 = vunpack.c.l.b16 %v261
    %v640 = vunpack.c.l.b16 %v262
    %v641 = vunpack.c.h.b16 %v262
    %v642 = vunpack.c.l.b16 %v263
    %v643 = vunpack.c.l.b16 %v264
    %v644 = vunpack.c.h.b16 %v264
    %v645 = vunpack.c.l.b16 %v265
    %v646 = vunpack.c.l.b16 %v266
    %v647 = vunpack.c.h.b16 %v266
    %v648 = vunpack.c.l.b16 %v267
    %v649 = vunpack.c.l.b16 %v268
    %v650 = vunpack.c.h.b16 %v268
    %v651 = vunpack.c.l.b16 %v269
    %v652 = vunpack.c.l.b16 %v270
    %v653 = vunpack.c.h.b16 %v270
    %v654 = vunpack.c.l.b16 %v271
    %v655 = vunpack.c.l.b16 %v272
    %v656 = vunpack.c.h.b16 %v272
    %v657 = vunpack.c.l.b16 %v273
    %v658 = vunpack.c.l.b16 %v274
    %v659 = vunpack.c.h.b16 %v274
    %v660 = vunpack.c.l.b16 %v275
    %v661 = vunpack.c.l.b16 %v276
    %v662 = vunpack.c.h.b16 %v276
    %v663 = vunpack.c.l.b16 %v277
    %v664 = vunpack.c.l.b16 %v278
    %v665 = vunpack.c.h.b16 %v278
    %v666 = vunpack.c.l.b16 %v279
    %v667 = vunpack.c.l.b16 %v280
    %v668 = vunpack.c.h.b16 %v280
    %v669 = vunpack.c.l.b16 %v281
    %v670 = vunpack.c.l.b16 %v282
    %v671 = vunpack.c.h.b16 %v282
    %v672 = vunpack.c.l.b16 %v283
    %v673 = vunpack.c.l.b16 %v284
    %v674 = vunpack.c.h.b16 %v284
    %v675 = vunpack.c.l.b16 %v285
    %v676 = vunpack.c.l.b16 %v286
    %v677 = vunpack.c.h.b16 %v286
    %v678 = vunpack.c.l.b16 %v287
    %v679 = vunpack.c.l.b16 %v288
    %v680 = vunpack.c.h.b16 %v288
    %v681 = vunpack.c.l.b16 %v289
    %v682 = vunpack.c.l.b16 %v290
    %v683 = vunpack.c.h.b16 %v290
    %v684 = vunpack.c.l.b16 %v291
    %v685 = vunpack.c.l.b16 %v292
    %v686 = vunpack.c.h.b16 %v292
    %v687 = vunpack.c.l.b16 %v293
    %v688 = vunpack.c.l.b16 %v294
    %v689 = vunpack.c.h.b16 %v294
    %v690 = vunpack.c.l.b16 %v295
    %v691 = vunpack.c.l.b16 %v296
    %v692 = vunpack.c.h.b16 %v296
    %v693 = vunpack.c.l.b16 %v297
    %v694 = vunpack.c.l.b16 %v298
    %v695 = vunpack.c.h.b16 %v298
    %v696 = vunpack.c.l.b16 %v299
    %v697 = vunpack.c.l.b16 %v300
    %v698 = vunpack.c.h.b16 %v300
    %v699 = vunpack.c.l.b16 %v301
    %v700 = vunpack.c.l.b16 %v302
    %v701 = vunpack.c.h.b16 %v302
    %v702 = vunpack.c.l.b16 %v303
    %v703 = vunpack.c.l.b16 %v304
    %v704 = vunpack.c.h.b16 %v304
    %v705 = vunpack.c.l.b16 %v305
    %v706 = vpack.c.b16 %v469, %v466
    %v707 = vpack.c.b16 %v470, %v467
    %v708 = vpack.c.b16 %v471, %v468
    %v709 = vpack.c.b16 %v475, %v472
    %v710 = vpack.c.b16 %v476, %v473
    %v711 = vpack.c.b16 %v477, %v474
    %v712 = vpack.c.b16 %v481, %v478
    %v713 = vpack.c.b16 %v482, %v479
    %v714 = vpack.c.b16 %v483, %v480
    %v715 = vpack.c.b16 %v487, %v484
    %v716 = vpack.c.b16 %v488, %v485
    %v717 = vpack.c.b16 %v489, %v486
    %v718 = vpack.c.b16 %v493, %v490
    %v719 = vpack.c.b16 %v494, %v491
    %v720 = vpack.c.b16 %v495, %v492
    %v721 = vpack.c.b16 %v499, %v496
    %v722 = vpack.c.b16 %v500, %v497
    %v723 = vpack.c.b16 %v501, %v498
    %v724 = vpack.c.b16 %v505, %v502
    %v725 = vpack.c.b16 %v506, %v503
    %v726 = vpack.c.b16 %v507, %v504
    %v727 = vpack.c.b16 %v511, %v508
    %v728 = vpack.c.b16 %v512, %v509
    %v729 = vpack.c.b16 %v513, %v510
    %v730 = vpack.c.b16 %v517, %v514
    %v731 = vpack.c.b16 %v518, %v515
    %v732 = vpack.c.b16 %v519, %v516
    %v733 = vpack.c.b16 %v523, %v520
    %v734 = vpack.c.b16 %v524, %v521
    %v735 = vpack.c.b16 %v525, %v522
    %v736 = vpack.c.b16 %v529, %v526
    %v737 = vpack.c.b16 %v530, %v527
    %v738 = vpack.c.b16 %v531, %v528
    %v739 = vpack.c.b16 %v535, %v532
    %v740 = vpack.c.b16 %v536, %v533
    %v741 = vpack.c.b16 %v537, %v534
    %v742 = vpack.c.b16 %v541, %v538
    %v743 = vpack.c.b16 %v542, %v539
    %v744 = vpack.c.b16 %v543, %v540
    %v745 = vpack.c.b16 %v547, %v544
    %v746 = vpack.c.b16 %v548, %v545
    %v747 = vpack.c.b16 %v549, %v546
    %v748 = vpack.c.b16 %v553, %v550
    %v749 = vpack.c.b16 %v554, %v551
    %v750 = vpack.c.b16 %v555, %v552
    %v751 = vpack.c.b16 %v559, %v556
    %v752 = vpack.c.b16 %v560, %v557
    %v753 = vpack.c.b16 %v561, %v558
    %v754 = vpack.c.b16 %v565, %v562
    %v755 = vpack.c.b16 %v566, %v563
    %v756 = vpack.c.b16 %v567, %v564
    %v757 = vpack.c.b16 %v571, %v568
    %v758 = vpack.c.b16 %v572, %v569
    %v759 = vpack.c.b16 %v573, %v570
    %v760 = vpack.c.b16 %v577, %v574
    %v761 = vpack.c.b16 %v578, %v575
    %v762 = vpack.c.b16 %v579, %v576
    %v763 = vpack.c.b16 %v583, %v580
    %v764 = vpack.c.b16 %v584, %v581
    %v765 = vpack.c.b16 %v585, %v582
    %v766 = vpack.c.b16 %v589, %v586
    %v767 = vpack.c.b16 %v590, %v587
    %v768 = vpack.c.b16 %v591, %v588
    %v769 = vpack.c.b16 %v595, %v592
    %v770 = vpack.c.b16 %v596, %v593
    %v771 = vpack.c.b16 %v597, %v594
    %v772 = vpack.c.b16 %v601, %v598
    %v773 = vpack.c.b16 %v602, %v599
    %v774 = vpack.c.b16 %v603, %v600
    %v775 = vpack.c.b16 %v607, %v604
    %v776 = vpack.c.b16 %v608, %v605
    %v777 = vpack.c.b16 %v609, %v606
    %v778 = vpack.c.b16 %v613, %v610
    %v779 = vpack.c.b16 %v614, %v611
    %v780 = vpack.c.b16 %v615, %v612
    %v781 = vpack.c.b16 %v619, %v616
    %v782 = vpack.c.b16 %v620, %v617
    %v783 = vpack.c.b16 %v621, %v618
    %v784 = vpack.c.b16 %v625, %v622
    %v785 = vpack.c.b16 %v626, %v623
    %v786 = vpack.c.b16 %v627, %v624
    %v787 = vpack.c.b16 %v631, %v628
    %v788 = vpack.c.b16 %v632, %v629
    %v789 = vpack.c.b16 %v633, %v630
    %v790 = vpack.c.b16 %v637, %v634
    %v791 = vpack.c.b16 %v638, %v635
    %v792 = vpack.c.b16 %v639, %v636
    %v793 = vpack.c.b16 %v643, %v640
    %v794 = vpack.c.b16 %v644, %v641
    %v795 = vpack.c.b16 %v645, %v642
    %v796 = vpack.c.b16 %v649, %v646
    %v797 = vpack.c.b16 %v650, %v647
    %v798 = vpack.c.b16 %v651, %v648
    %v799 = vpack.c.b16 %v655, %v652
    %v800 = vpack.c.b16 %v656, %v653
    %v801 = vpack.c.b16 %v657, %v654
    %v802 = vpack.c.b16 %v661, %v658
    %v803 = vpack.c.b16 %v662, %v659
    %v804 = vpack.c.b16 %v663, %v660
    %v805 = vpack.c.b16 %v667, %v664
    %v806 = vpack.c.b16 %v668, %v665
    %v807 = vpack.c.b16 %v669, %v666
    %v808 = vpack.c.b16 %v673, %v670
    %v809 = vpack.c.b16 %v674, %v671
    %v810 = vpack.c.b16 %v675, %v672
    %v811 = vpack.c.b16 %v679, %v676
    %v812 = vpack.c.b16 %v680, %v677
    %v813 = vpack.c.b16 %v681, %v678
    %v814 = vpack.c.b16 %v685, %v682
    %v815 = vpack.c.b16 %v686, %v683
    %v816 = vpack.c.b16 %v687, %v684
    %v817 = vpack.c.b16 %v691, %v688
    %v818 = vpack.c.b16 %v692, %v689
    %v819 = vpack.c.b16 %v693, %v690
    %v820 = vpack.c.b16 %v697, %v694
    %v821 = vpack.c.b16 %v698, %v695
    %v822 = vpack.c.b16 %v699, %v696
    %v823 = vpack.c.b16 %v703, %v700
    %v824 = vpack.c.b16 %v704, %v701
    %v825 = vpack.c.b16 %v705, %v702
    %946 = vmatprep.subr.bf16.mxu0 %v707
    %947 = vmatpush1.bf16.msra.mxu0 %v706
    %948 = vmatprep.subr.bf16.mxu0 %v710
    %949 = vmatpush1.bf16.msra.mxu0 %v709
    %950 = vmatprep.subr.bf16.mxu0 %v713
    %951 = vmatpush1.bf16.msra.mxu0 %v712
    %952 = vmatprep.subr.bf16.mxu0 %v716
    %953 = vmatpush1.bf16.msra.mxu0 %v715
    %954 = vmatprep.subr.bf16.mxu0 %v719
    %955 = vmatpush1.bf16.msra.mxu0 %v718
    %956 = vmatprep.subr.bf16.mxu0 %v722
    %957 = vmatpush1.bf16.msra.mxu0 %v721
    %958 = vmatprep.subr.bf16.mxu0 %v725
    %959 = vmatpush1.bf16.msra.mxu0 %v724
    %960 = vmatprep.subr.bf16.mxu0 %v728
    %961 = vmatpush1.bf16.msra.mxu0 %v727
    %962 = vmatprep.subr.bf16.mxu0 %v731
    %963 = vmatpush1.bf16.msra.mxu0 %v730
    %964 = vmatprep.subr.bf16.mxu0 %v734
    %965 = vmatpush1.bf16.msra.mxu0 %v733
    %966 = vmatprep.subr.bf16.mxu0 %v737
    %967 = vmatpush1.bf16.msra.mxu0 %v736
    %968 = vmatprep.subr.bf16.mxu0 %v740
    %969 = vmatpush1.bf16.msra.mxu0 %v739
    %970 = vmatprep.subr.bf16.mxu0 %v743
    %971 = vmatpush1.bf16.msra.mxu0 %v742
    %972 = vmatprep.subr.bf16.mxu0 %v746
    %973 = vmatpush1.bf16.msra.mxu0 %v745
    %974 = vmatprep.subr.bf16.mxu0 %v749
    %975 = vmatpush1.bf16.msra.mxu0 %v748
    %976 = vmatprep.subr.bf16.mxu0 %v752
    %977 = vmatpush1.bf16.msra.mxu0 %v751
    %978 = vmatprep.mubr.bf16.mxu0 %v111
    %979 = vmatmul.mubr.bf16.gmra.mrb[0].mxu0 %v98
    %v980 = vpop.f32.mrb[0].mxu0
    %v981 = vadd.f32 0.0, %v980
    %v982 = vpop.f32.mrb[0].mxu0
    %v983 = vadd.f32 0.0, %v982
    %v984 = vpop.f32.mrb[0].mxu0
    %v985 = vadd.f32 0.0, %v984
    %v986 = vpop.f32.mrb[0].mxu0
    %v987 = vadd.f32 0.0, %v986
    %988 = vmatprep.mubr.bf16.mxu0 %v112
    %989 = vmatmul.mubr.bf16.gmra.mrb[0].mxu0 %v99
    %v990 = vpop.f32.mrb[0].mxu0
    %v991 = vadd.f32 0.0, %v990
    %v992 = vpop.f32.mrb[0].mxu0
    %v993 = vadd.f32 0.0, %v992
    %v994 = vpop.f32.mrb[0].mxu0
    %v995 = vadd.f32 0.0, %v994
    %v996 = vpop.f32.mrb[0].mxu0
    %v997 = vadd.f32 0.0, %v996
    %998 = vdwg.mxu0
    %999 = vmatprep.subr.bf16.mxu0 %v755
    %1000 = vmatpush1.bf16.msra.mxu0 %v754
    %1001 = vmatprep.subr.bf16.mxu0 %v758
    %1002 = vmatpush1.bf16.msra.mxu0 %v757
    %1003 = vmatprep.subr.bf16.mxu0 %v761
    %1004 = vmatpush1.bf16.msra.mxu0 %v760
    %1005 = vmatprep.subr.bf16.mxu0 %v764
    %1006 = vmatpush1.bf16.msra.mxu0 %v763
    %1007 = vmatprep.subr.bf16.mxu0 %v767
    %1008 = vmatpush1.bf16.msra.mxu0 %v766
    %1009 = vmatprep.subr.bf16.mxu0 %v770
    %1010 = vmatpush1.bf16.msra.mxu0 %v769
    %1011 = vmatprep.subr.bf16.mxu0 %v773
    %1012 = vmatpush1.bf16.msra.mxu0 %v772
    %1013 = vmatprep.subr.bf16.mxu0 %v776
    %1014 = vmatpush1.bf16.msra.mxu0 %v775
    %1015 = vmatprep.subr.bf16.mxu0 %v779
    %1016 = vmatpush1.bf16.msra.mxu0 %v778
    %1017 = vmatprep.subr.bf16.mxu0 %v782
    %1018 = vmatpush1.bf16.msra.mxu0 %v781
    %1019 = vmatprep.subr.bf16.mxu0 %v785
    %1020 = vmatpush1.bf16.msra.mxu0 %v784
    %1021 = vmatprep.subr.bf16.mxu0 %v788
    %1022 = vmatpush1.bf16.msra.mxu0 %v787
    %1023 = vmatprep.subr.bf16.mxu0 %v791
    %1024 = vmatpush1.bf16.msra.mxu0 %v790
    %1025 = vmatprep.subr.bf16.mxu0 %v794
    %1026 = vmatpush1.bf16.msra.mxu0 %v793
    %1027 = vmatprep.subr.bf16.mxu0 %v797
    %1028 = vmatpush1.bf16.msra.mxu0 %v796
    %1029 = vmatprep.subr.bf16.mxu0 %v800
    %1030 = vmatpush1.bf16.msra.mxu0 %v799
    %1031 = vmatprep.mubr.bf16.mxu0 %v133
    %1032 = vmatmul.mubr.bf16.gmra.mrb[0].mxu0 %v122
    %v1033 = vpop.f32.mrb[0].mxu0
    %v1034 = vadd.f32 %v981, %v1033
    %v1035 = vpop.f32.mrb[0].mxu0
    %v1036 = vadd.f32 %v983, %v1035
    %v1037 = vpop.f32.mrb[0].mxu0
    %v1038 = vadd.f32 %v985, %v1037
    %v1039 = vpop.f32.mrb[0].mxu0
    %v1040 = vadd.f32 %v987, %v1039
    %1041 = vmatprep.mubr.bf16.mxu0 %v134
    %1042 = vmatmul.mubr.bf16.gmra.mrb[0].mxu0 %v123
    %v1043 = vpop.f32.mrb[0].mxu0
    %v1044 = vadd.f32 %v991, %v1043
    %v1045 = vpop.f32.mrb[0].mxu0
    %v1046 = vadd.f32 %v993, %v1045
    %v1047 = vpop.f32.mrb[0].mxu0
    %v1048 = vadd.f32 %v995, %v1047
    %v1049 = vpop.f32.mrb[0].mxu0
    %v1050 = vadd.f32 %v997, %v1049
    %1051 = vdwg.mxu0
    %1052 = vmatprep.subr.bf16.mxu0 %v803
    %1053 = vmatpush1.bf16.msra.mxu0 %v802
    %1054 = vmatprep.subr.bf16.mxu0 %v806
    %1055 = vmatpush1.bf16.msra.mxu0 %v805
    %1056 = vmatprep.subr.bf16.mxu0 %v809
    %1057 = vmatpush1.bf16.msra.mxu0 %v808
    %1058 = vmatprep.subr.bf16.mxu0 %v812
    %1059 = vmatpush1.bf16.msra.mxu0 %v811
    %1060 = vmatprep.subr.bf16.mxu0 %v815
    %1061 = vmatpush1.bf16.msra.mxu0 %v814
    %1062 = vmatprep.subr.bf16.mxu0 %v818
    %1063 = vmatpush1.bf16.msra.mxu0 %v817
    %1064 = vmatprep.subr.bf16.mxu0 %v821
    %1065 = vmatpush1.bf16.msra.mxu0 %v820
    %1066 = vmatprep.subr.bf16.mxu0 %v824
    %1067 = vmatpush1.bf16.msra.mxu0 %v823
    %1068 = vmatprep.subr.bf16.mxu0 0
    %1069 = vmatpush1.bf16.msra.mxu0 0
    %1070 = vmatprep.subr.bf16.mxu0 0
    %1071 = vmatpush1.bf16.msra.mxu0 0
    %1072 = vmatprep.subr.bf16.mxu0 0
    %1073 = vmatpush1.bf16.msra.mxu0 0
    %1074 = vmatprep.subr.bf16.mxu0 0
    %1075 = vmatpush1.bf16.msra.mxu0 0
    %1076 = vmatprep.subr.bf16.mxu0 0
    %1077 = vmatpush1.bf16.msra.mxu0 0
    %1078 = vmatprep.subr.bf16.mxu0 0
    %1079 = vmatpush1.bf16.msra.mxu0 0
    %1080 = vmatprep.subr.bf16.mxu0 0
    %1081 = vmatpush1.bf16.msra.mxu0 0
    %1082 = vmatprep.subr.bf16.mxu0 0
    %1083 = vmatpush1.bf16.msra.mxu0 0
    %1084 = vmatprep.mubr.bf16.mxu0 0
    %1085 = vmatmul.mubr.bf16.gmra.mrb[0].mxu0 %v144
    %v1086 = vpop.f32.mrb[0].mxu0
    %v1087 = vadd.f32 %v1034, %v1086
    %v1088 = vpop.f32.mrb[0].mxu0
    %v1089 = vadd.f32 %v1036, %v1088
    %v1090 = vpop.f32.mrb[0].mxu0
    %v1091 = vadd.f32 %v1038, %v1090
    %v1092 = vpop.f32.mrb[0].mxu0
    %v1093 = vadd.f32 %v1040, %v1092
    %1094 = vmatprep.mubr.bf16.mxu0 0
    %1095 = vmatmul.mubr.bf16.gmra.mrb[0].mxu0 %v145
    %v1096 = vpop.f32.mrb[0].mxu0
    %v1097 = vadd.f32 %v1044, %v1096
    %v1098 = vpop.f32.mrb[0].mxu0
    %v1099 = vadd.f32 %v1046, %v1098
    %v1100 = vpop.f32.mrb[0].mxu0
    %v1101 = vadd.f32 %v1048, %v1100
    %v1102 = vpop.f32.mrb[0].mxu0
    %v1103 = vadd.f32 %v1050, %v1102
    %1104 = vdwg.mxu0
    %1105 = vmatprep.subr.bf16.mxu0 0
    %1106 = vmatpush1.bf16.msra.mxu0 %v708
    %1107 = vmatprep.subr.bf16.mxu0 0
    %1108 = vmatpush1.bf16.msra.mxu0 %v711
    %1109 = vmatprep.subr.bf16.mxu0 0
    %1110 = vmatpush1.bf16.msra.mxu0 %v714
    %1111 = vmatprep.subr.bf16.mxu0 0
    %1112 = vmatpush1.bf16.msra.mxu0 %v717
    %1113 = vmatprep.subr.bf16.mxu0 0
    %1114 = vmatpush1.bf16.msra.mxu0 %v720
    %1115 = vmatprep.subr.bf16.mxu0 0
    %1116 = vmatpush1.bf16.msra.mxu0 %v723
    %1117 = vmatprep.subr.bf16.mxu0 0
    %1118 = vmatpush1.bf16.msra.mxu0 %v726
    %1119 = vmatprep.subr.bf16.mxu0 0
    %1120 = vmatpush1.bf16.msra.mxu0 %v729
    %1121 = vmatprep.subr.bf16.mxu0 0
    %1122 = vmatpush1.bf16.msra.mxu0 %v732
    %1123 = vmatprep.subr.bf16.mxu0 0
    %1124 = vmatpush1.bf16.msra.mxu0 %v735
    %1125 = vmatprep.subr.bf16.mxu0 0
    %1126 = vmatpush1.bf16.msra.mxu0 %v738
    %1127 = vmatprep.subr.bf16.mxu0 0
    %1128 = vmatpush1.bf16.msra.mxu0 %v741
    %1129 = vmatprep.subr.bf16.mxu0 0
    %1130 = vmatpush1.bf16.msra.mxu0 %v744
    %1131 = vmatprep.subr.bf16.mxu0 0
    %1132 = vmatpush1.bf16.msra.mxu0 %v747
    %1133 = vmatprep.subr.bf16.mxu0 0
    %1134 = vmatpush1.bf16.msra.mxu0 %v750
    %1135 = vmatprep.subr.bf16.mxu0 0
    %1136 = vmatpush1.bf16.msra.mxu0 %v753
    %1137 = vmatprep.mubr.bf16.mxu0 %v111
    %1138 = vmatmul.mubr.bf16.gmra.mrb[0].mxu0 %v98
    %v1139 = vpop.f32.mrb[0].mxu0
    %v1140 = vadd.f32 0.0, %v1139
    %v1141 = vpop.f32.mrb[0].mxu0
    %v1142 = vpop.f32.mrb[0].mxu0
    %v1143 = vadd.f32 0.0, %v1142
    %v1144 = vpop.f32.mrb[0].mxu0
    %1145 = vmatprep.mubr.bf16.mxu0 %v112
    %1146 = vmatmul.mubr.bf16.gmra.mrb[0].mxu0 %v99
    %v1147 = vpop.f32.mrb[0].mxu0
    %v1148 = vadd.f32 0.0, %v1147
    %v1149 = vpop.f32.mrb[0].mxu0
    %v1150 = vpop.f32.mrb[0].mxu0
    %v1151 = vadd.f32 0.0, %v1150
    %v1152 = vpop.f32.mrb[0].mxu0
    %1153 = vdwg.mxu0
    %1154 = vmatprep.subr.bf16.mxu0 0
    %1155 = vmatpush1.bf16.msra.mxu0 %v756
    %1156 = vmatprep.subr.bf16.mxu0 0
    %1157 = vmatpush1.bf16.msra.mxu0 %v759
    %1158 = vmatprep.subr.bf16.mxu0 0
    %1159 = vmatpush1.bf16.msra.mxu0 %v762
    %1160 = vmatprep.subr.bf16.mxu0 0
    %1161 = vmatpush1.bf16.msra.mxu0 %v765
    %1162 = vmatprep.subr.bf16.mxu0 0
    %1163 = vmatpush1.bf16.msra.mxu0 %v768
    %1164 = vmatprep.subr.bf16.mxu0 0
    %1165 = vmatpush1.bf16.msra.mxu0 %v771
    %1166 = vmatprep.subr.bf16.mxu0 0
    %1167 = vmatpush1.bf16.msra.mxu0 %v774
    %1168 = vmatprep.subr.bf16.mxu0 0
    %1169 = vmatpush1.bf16.msra.mxu0 %v777
    %1170 = vmatprep.subr.bf16.mxu0 0
    %1171 = vmatpush1.bf16.msra.mxu0 %v780
    %1172 = vmatprep.subr.bf16.mxu0 0
    %1173 = vmatpush1.bf16.msra.mxu0 %v783
    %1174 = vmatprep.subr.bf16.mxu0 0
    %1175 = vmatpush1.bf16.msra.mxu0 %v786
    %1176 = vmatprep.subr.bf16.mxu0 0
    %1177 = vmatpush1.bf16.msra.mxu0 %v789
    %1178 = vmatprep.subr.bf16.mxu0 0
    %1179 = vmatpush1.bf16.msra.mxu0 %v792
    %1180 = vmatprep.subr.bf16.mxu0 0
    %1181 = vmatpush1.bf16.msra.mxu0 %v795
    %1182 = vmatprep.subr.bf16.mxu0 0
    %1183 = vmatpush1.bf16.msra.mxu0 %v798
    %1184 = vmatprep.subr.bf16.mxu0 0
    %1185 = vmatpush1.bf16.msra.mxu0 %v801
    %1186 = vmatprep.mubr.bf16.mxu0 %v133
    %1187 = vmatmul.mubr.bf16.gmra.mrb[0].mxu0 %v122
    %v1188 = vpop.f32.mrb[0].mxu0
    %v1189 = vadd.f32 %v1140, %v1188
    %v1190 = vpop.f32.mrb[0].mxu0
    %v1191 = vpop.f32.mrb[0].mxu0
    %v1192 = vadd.f32 %v1143, %v1191
    %v1193 = vpop.f32.mrb[0].mxu0
    %1194 = vmatprep.mubr.bf16.mxu0 %v134
    %1195 = vmatmul.mubr.bf16.gmra.mrb[0].mxu0 %v123
    %v1196 = vpop.f32.mrb[0].mxu0
    %v1197 = vadd.f32 %v1148, %v1196
    %v1198 = vpop.f32.mrb[0].mxu0
    %v1199 = vpop.f32.mrb[0].mxu0
    %v1200 = vadd.f32 %v1151, %v1199
    %v1201 = vpop.f32.mrb[0].mxu0
    %1202 = vdwg.mxu0
    %1203 = vmatprep.subr.bf16.mxu0 0
    %1204 = vmatpush1.bf16.msra.mxu0 %v804
    %1205 = vmatprep.subr.bf16.mxu0 0
    %1206 = vmatpush1.bf16.msra.mxu0 %v807
    %1207 = vmatprep.subr.bf16.mxu0 0
    %1208 = vmatpush1.bf16.msra.mxu0 %v810
    %1209 = vmatprep.subr.bf16.mxu0 0
    %1210 = vmatpush1.bf16.msra.mxu0 %v813
    %1211 = vmatprep.subr.bf16.mxu0 0
    %1212 = vmatpush1.bf16.msra.mxu0 %v816
    %1213 = vmatprep.subr.bf16.mxu0 0
    %1214 = vmatpush1.bf16.msra.mxu0 %v819
    %1215 = vmatprep.subr.bf16.mxu0 0
    %1216 = vmatpush1.bf16.msra.mxu0 %v822
    %1217 = vmatprep.subr.bf16.mxu0 0
    %1218 = vmatpush1.bf16.msra.mxu0 %v825
    %1219 = vmatprep.subr.bf16.mxu0 0
    %1220 = vmatpush1.bf16.msra.mxu0 0
    %1221 = vmatprep.subr.bf16.mxu0 0
    %1222 = vmatpush1.bf16.msra.mxu0 0
    %1223 = vmatprep.subr.bf16.mxu0 0
    %1224 = vmatpush1.bf16.msra.mxu0 0
    %1225 = vmatprep.subr.bf16.mxu0 0
    %1226 = vmatpush1.bf16.msra.mxu0 0
    %1227 = vmatprep.subr.bf16.mxu0 0
    %1228 = vmatpush1.bf16.msra.mxu0 0
    %1229 = vmatprep.subr.bf16.mxu0 0
    %1230 = vmatpush1.bf16.msra.mxu0 0
    %1231 = vmatprep.subr.bf16.mxu0 0
    %1232 = vmatpush1.bf16.msra.mxu0 0
    %1233 = vmatprep.subr.bf16.mxu0 0
    %1234 = vmatpush1.bf16.msra.mxu0 0
    %1235 = vmatprep.mubr.bf16.mxu0 0
    %1236 = vmatmul.mubr.bf16.gmra.mrb[0].mxu0 %v144
    %v1237 = vpop.f32.mrb[0].mxu0
    %v1238 = vadd.f32 %v1189, %v1237
    %v1239 = vpop.f32.mrb[0].mxu0
    %v1240 = vpop.f32.mrb[0].mxu0
    %v1241 = vadd.f32 %v1192, %v1240
    %v1242 = vpop.f32.mrb[0].mxu0
    %1243 = vmatprep.mubr.bf16.mxu0 0
    %1244 = vmatmul.mubr.bf16.gmra.mrb[0].mxu0 %v145
    %v1245 = vpop.f32.mrb[0].mxu0
    %v1246 = vadd.f32 %v1197, %v1245
    %v1247 = vpop.f32.mrb[0].mxu0
    %v1248 = vpop.f32.mrb[0].mxu0
    %v1249 = vadd.f32 %v1200, %v1248
    %v1250 = vpop.f32.mrb[0].mxu0
    %1251 = vdwg.mxu0
    %v1252 = vmax.f32 %v1087, 0.0
    %v1253 = vmax.f32 %v1089, 0.0
    %v1254 = vmax.f32 %v1238, 0.0
    %v1255 = vmax.f32 %v1091, 0.0
    %v1256 = vmax.f32 %v1093, 0.0
    %v1257 = vmax.f32 %v1241, 0.0
    %v1258 = vmax.f32 %v1097, 0.0
    %v1259 = vmax.f32 %v1099, 0.0
    %v1260 = vmax.f32 %v1246, 0.0
    %v1261 = vmax.f32 %v1101, 0.0
    %v1262 = vmax.f32 %v1103, 0.0
    %v1263 = vmax.f32 %v1249, 0.0
    %v1264 = vld [vmem:[#allocation5] sm:$0xff]
    %v1265 = vld [vmem:[#allocation5 + $0x8] sm:$0xff]
    %v1266 = vld [vmem:[#allocation5 + $0x10] sm:$0xff]
    %v1267 = vld [vmem:[#allocation5 + $0x18] sm:$0xff]
    %v1268 = vld [vmem:[#allocation5 + $0x20] sm:$0xff]
    %v1269 = vld [vmem:[#allocation5 + $0x28] sm:$0xff]
    %v1270 = vmul.f32 %v1252, %v1264
    %v1271 = vmul.f32 %v1253, %v1265
    %v1272 = vmul.f32 %v1254, %v1266
    %v1273 = vmul.f32 %v1255, %v1267
    %v1274 = vmul.f32 %v1256, %v1268
    %v1275 = vmul.f32 %v1257, %v1269
    %v1276 = vmul.f32 %v1258, %v1264
    %v1277 = vmul.f32 %v1259, %v1265
    %v1278 = vmul.f32 %v1260, %v1266
    %v1279 = vmul.f32 %v1261, %v1267
    %v1280 = vmul.f32 %v1262, %v1268
    %v1281 = vmul.f32 %v1263, %v1269
    %v1282 = vmax.f32 %v1270, %v1273
    %v1283 = vrot.slane %v1282, 4
    %v1284 = vmax.f32 %v1282, %v1283
    %v1285 = vrot.slane %v1284, 2
    %v1286 = vmax.f32 %v1284, %v1285
    %v1287 = vrot.slane %v1286, 1
    %v1288 = vmax.f32 %v1286, %v1287
    %v1289 = vmax.f32 %v1271, %v1274
    %v1290 = vrot.slane %v1289, 4
    %v1291 = vmax.f32 %v1289, %v1290
    %v1292 = vrot.slane %v1291, 2
    %v1293 = vmax.f32 %v1291, %v1292
    %v1294 = vrot.slane %v1293, 1
    %v1295 = vmax.f32 %v1293, %v1294
    %v1296 = vmax.f32 %v1272, %v1275
    %v1297 = vrot.slane %v1296, 4
    %v1298 = vmax.f32 %v1296, %v1297
    %v1299 = vrot.slane %v1298, 2
    %v1300 = vmax.f32 %v1298, %v1299
    %v1301 = vrot.slane %v1300, 1
    %v1302 = vmax.f32 %v1300, %v1301
    %v1303 = vmax.f32 %v1276, %v1279
    %v1304 = vrot.slane %v1303, 4
    %v1305 = vmax.f32 %v1303, %v1304
    %v1306 = vrot.slane %v1305, 2
    %v1307 = vmax.f32 %v1305, %v1306
    %v1308 = vrot.slane %v1307, 1
    %v1309 = vmax.f32 %v1307, %v1308
    %v1310 = vmax.f32 %v1277, %v1280
    %v1311 = vrot.slane %v1310, 4
    %v1312 = vmax.f32 %v1310, %v1311
    %v1313 = vrot.slane %v1312, 2
    %v1314 = vmax.f32 %v1312, %v1313
    %v1315 = vrot.slane %v1314, 1
    %v1316 = vmax.f32 %v1314, %v1315
    %v1317 = vmax.f32 %v1278, %v1281
    %v1318 = vrot.slane %v1317, 4
    %v1319 = vmax.f32 %v1317, %v1318
    %v1320 = vrot.slane %v1319, 2
    %v1321 = vmax.f32 %v1319, %v1320
    %v1322 = vrot.slane %v1321, 1
    %v1323 = vmax.f32 %v1321, %v1322
    %v1324 = vld [vmem:[#allocation7] sm:$0xff]
    %v1325 = vld [vmem:[#allocation7 + $0x8] sm:$0xff]
    %v1326 = vld [vmem:[#allocation7 + $0x10] sm:$0xff]
    %v1327 = vld [vmem:[#allocation7 + $0x18] sm:$0xff]
    %v1328 = vld [vmem:[#allocation7 + $0x20] sm:$0xff]
    %v1329 = vld [vmem:[#allocation7 + $0x28] sm:$0xff]
    %v1330 = vld [vmem:[#allocation7 + $0x30] sm:$0xff]
    %v1331 = vld [vmem:[#allocation7 + $0x38] sm:$0xff]
    %v1332 = vld [vmem:[#allocation7 + $0x40] sm:$0xff]
    %v1333 = vld [vmem:[#allocation7 + $0x48] sm:$0xff]
    %v1334 = vld [vmem:[#allocation7 + $0x50] sm:$0xff]
    %v1335 = vld [vmem:[#allocation7 + $0x58] sm:$0xff]
    %v1336 = vld [vmem:[#allocation7 + $0x60] sm:$0xff]
    %v1337 = vld [vmem:[#allocation7 + $0x68] sm:$0xff]
    %v1338 = vld [vmem:[#allocation7 + $0x70] sm:$0xff]
    %v1339 = vld [vmem:[#allocation7 + $0x78] sm:$0xff]
    %v1340 = vld [vmem:[#allocation7 + $0x80] sm:$0xff]
    %v1341 = vld [vmem:[#allocation7 + $0x88] sm:$0xff]
    %v1342 = vld [vmem:[#allocation7 + $0x90] sm:$0xff]
    %v1343 = vld [vmem:[#allocation7 + $0x98] sm:$0xff]
    %v1344 = vld [vmem:[#allocation7 + $0xa0] sm:$0xff]
    %v1345 = vld [vmem:[#allocation7 + $0xa8] sm:$0xff]
    %v1346 = vld [vmem:[#allocation7 + $0xb0] sm:$0xff]
    %v1347 = vld [vmem:[#allocation7 + $0xb8] sm:$0xff]
    %v1348 = vld [vmem:[#allocation7 + $0xc0] sm:$0xff]
    %v1349 = vld [vmem:[#allocation7 + $0xc8] sm:$0xff]
    %v1350 = vld [vmem:[#allocation7 + $0xd0] sm:$0xff]
    %v1351 = vld [vmem:[#allocation7 + $0xd8] sm:$0xff]
    %v1352 = vld [vmem:[#allocation7 + $0xe0] sm:$0xff]
    %v1353 = vld [vmem:[#allocation7 + $0xe8] sm:$0xff]
    %v1354 = vld [vmem:[#allocation7 + $0xf0] sm:$0xff]
    %v1355 = vld [vmem:[#allocation7 + $0xf8] sm:$0xff]
    %v1356 = vld [vmem:[#allocation7 + $0x100] sm:$0xff]
    %v1357 = vld [vmem:[#allocation7 + $0x108] sm:$0xff]
    %v1358 = vld [vmem:[#allocation7 + $0x110] sm:$0xff]
    %v1359 = vld [vmem:[#allocation7 + $0x118] sm:$0xff]
    %v1360 = vld [vmem:[#allocation7 + $0x120] sm:$0xff]
    %v1361 = vld [vmem:[#allocation7 + $0x128] sm:$0xff]
    %v1362 = vld [vmem:[#allocation7 + $0x130] sm:$0xff]
    %v1363 = vld [vmem:[#allocation7 + $0x138] sm:$0xff]
    %v1364 = vld [vmem:[#allocation7 + $0x140] sm:$0xff]
    %v1365 = vld [vmem:[#allocation7 + $0x148] sm:$0xff]
    %v1366 = vld [vmem:[#allocation7 + $0x150] sm:$0xff]
    %v1367 = vld [vmem:[#allocation7 + $0x158] sm:$0xff]
    %v1368 = vld [vmem:[#allocation7 + $0x160] sm:$0xff]
    %v1369 = vld [vmem:[#allocation7 + $0x168] sm:$0xff]
    %v1370 = vld [vmem:[#allocation7 + $0x170] sm:$0xff]
    %v1371 = vld [vmem:[#allocation7 + $0x178] sm:$0xff]
    %v1372 = vld [vmem:[%s4] sm:$0x1]
    %v1374 = vlaneseq
    %v1375 = vshrl.u32 %v1374, 7
    %v1376 = vsub.s32 0, %v1375
    %v1377 = vrot.slane %v1372, %v1376
    %vm1385 = vcmask 1041409
    %v1386 = vsel %vm1385, %v1309, %v1288
    %v1387 = vsel %vm1385, %v1316, %v1295
    %v1388 = vsel %vm1385, %v1323, %v1302
    %1392 = vmatprep.subr.mxu0 0.0
    %1393 = vmatpush1.msra.mxu0 %v1324
    %1394 = vmatprep.subr.mxu0 0.0
    %1395 = vmatpush1.msra.mxu0 %v1325
    %1396 = vmatprep.subr.mxu0 0.0
    %1397 = vmatpush1.msra.mxu0 %v1326
    %1398 = vmatprep.subr.mxu0 0.0
    %1399 = vmatpush1.msra.mxu0 %v1327
    %1400 = vmatprep.subr.mxu0 0.0
    %1401 = vmatpush1.msra.mxu0 %v1328
    %1402 = vmatprep.subr.mxu0 0.0
    %1403 = vmatpush1.msra.mxu0 %v1329
    %1404 = vmatprep.subr.mxu0 0.0
    %1405 = vmatpush1.msra.mxu0 %v1330
    %1406 = vmatprep.subr.mxu0 0.0
    %1407 = vmatpush1.msra.mxu0 %v1331
    %1408 = vmatprep.subr.mxu0 0.0
    %1409 = vmatpush1.msra.mxu0 %v1332
    %1410 = vmatprep.subr.mxu0 0.0
    %1411 = vmatpush1.msra.mxu0 %v1333
    %1412 = vmatprep.subr.mxu0 0.0
    %1413 = vmatpush1.msra.mxu0 %v1334
    %1414 = vmatprep.subr.mxu0 0.0
    %1415 = vmatpush1.msra.mxu0 %v1335
    %1416 = vmatprep.subr.mxu0 0.0
    %1417 = vmatpush1.msra.mxu0 %v1336
    %1418 = vmatprep.subr.mxu0 0.0
    %1419 = vmatpush1.msra.mxu0 %v1337
    %1420 = vmatprep.subr.mxu0 0.0
    %1421 = vmatpush1.msra.mxu0 %v1338
    %1422 = vmatprep.subr.mxu0 0.0
    %1423 = vmatpush1.msra.mxu0 %v1339
    %1424 = vmatprep.subr.mxu0 0.0
    %1425 = vmatpush1.msra.mxu0 %v1340
    %1426 = vmatprep.subr.mxu0 0.0
    %1427 = vmatpush1.msra.mxu0 %v1341
    %1428 = vmatprep.subr.mxu0 0.0
    %1429 = vmatpush1.msra.mxu0 %v1342
    %1430 = vmatprep.subr.mxu0 0.0
    %1431 = vmatpush1.msra.mxu0 %v1343
    %1432 = vmatprep.subr.mxu0 0.0
    %1433 = vmatpush1.msra.mxu0 %v1344
    %1434 = vmatprep.subr.mxu0 0.0
    %1435 = vmatpush1.msra.mxu0 %v1345
    %1436 = vmatprep.subr.mxu0 0.0
    %1437 = vmatpush1.msra.mxu0 %v1346
    %1438 = vmatprep.subr.mxu0 0.0
    %1439 = vmatpush1.msra.mxu0 %v1347
    %1440 = vmatprep.subr.mxu0 0.0
    %1441 = vmatpush1.msra.mxu0 %v1348
    %1442 = vmatprep.subr.mxu0 0.0
    %1443 = vmatpush1.msra.mxu0 %v1349
    %1444 = vmatprep.subr.mxu0 0.0
    %1445 = vmatpush1.msra.mxu0 %v1350
    %1446 = vmatprep.subr.mxu0 0.0
    %1447 = vmatpush1.msra.mxu0 %v1351
    %1448 = vmatprep.subr.mxu0 0.0
    %1449 = vmatpush1.msra.mxu0 %v1352
    %1450 = vmatprep.subr.mxu0 0.0
    %1451 = vmatpush1.msra.mxu0 %v1353
    %1452 = vmatprep.subr.mxu0 0.0
    %1453 = vmatpush1.msra.mxu0 %v1354
    %1454 = vmatprep.subr.mxu0 0.0
    %1455 = vmatpush1.msra.mxu0 %v1355
    %1456 = vmatprep.mubr.f32.mxu0 %v1387
    %1457 = vmatmul.mubr.f32.gmra.mrb[0].mxu0 %v1386
    %v1458 = vpop.f32.mrb[0].mxu0
    %v1459 = vadd.f32 %v1377, %v1458
    %v1460 = vpop.f32.mrb[0].mxu0
    %1461 = vdwg.mxu0
    %1462 = vmatprep.subr.mxu0 0.0
    %1463 = vmatpush1.msra.mxu0 %v1356
    %1464 = vmatprep.subr.mxu0 0.0
    %1465 = vmatpush1.msra.mxu0 %v1357
    %1466 = vmatprep.subr.mxu0 0.0
    %1467 = vmatpush1.msra.mxu0 %v1358
    %1468 = vmatprep.subr.mxu0 0.0
    %1469 = vmatpush1.msra.mxu0 %v1359
    %1470 = vmatprep.subr.mxu0 0.0
    %1471 = vmatpush1.msra.mxu0 %v1360
    %1472 = vmatprep.subr.mxu0 0.0
    %1473 = vmatpush1.msra.mxu0 %v1361
    %1474 = vmatprep.subr.mxu0 0.0
    %1475 = vmatpush1.msra.mxu0 %v1362
    %1476 = vmatprep.subr.mxu0 0.0
    %1477 = vmatpush1.msra.mxu0 %v1363
    %1478 = vmatprep.subr.mxu0 0.0
    %1479 = vmatpush1.msra.mxu0 %v1364
    %1480 = vmatprep.subr.mxu0 0.0
    %1481 = vmatpush1.msra.mxu0 %v1365
    %1482 = vmatprep.subr.mxu0 0.0
    %1483 = vmatpush1.msra.mxu0 %v1366
    %1484 = vmatprep.subr.mxu0 0.0
    %1485 = vmatpush1.msra.mxu0 %v1367
    %1486 = vmatprep.subr.mxu0 0.0
    %1487 = vmatpush1.msra.mxu0 %v1368
    %1488 = vmatprep.subr.mxu0 0.0
    %1489 = vmatpush1.msra.mxu0 %v1369
    %1490 = vmatprep.subr.mxu0 0.0
    %1491 = vmatpush1.msra.mxu0 %v1370
    %1492 = vmatprep.subr.mxu0 0.0
    %1493 = vmatpush1.msra.mxu0 %v1371
    %1494 = vmatprep.subr.mxu0 0.0
    %1495 = vmatpush1.msra.mxu0 0.0
    %1496 = vmatprep.subr.mxu0 0.0
    %1497 = vmatpush1.msra.mxu0 0.0
    %1498 = vmatprep.subr.mxu0 0.0
    %1499 = vmatpush1.msra.mxu0 0.0
    %1500 = vmatprep.subr.mxu0 0.0
    %1501 = vmatpush1.msra.mxu0 0.0
    %1502 = vmatprep.subr.mxu0 0.0
    %1503 = vmatpush1.msra.mxu0 0.0
    %1504 = vmatprep.subr.mxu0 0.0
    %1505 = vmatpush1.msra.mxu0 0.0
    %1506 = vmatprep.subr.mxu0 0.0
    %1507 = vmatpush1.msra.mxu0 0.0
    %1508 = vmatprep.subr.mxu0 0.0
    %1509 = vmatpush1.msra.mxu0 0.0
    %1510 = vmatprep.subr.mxu0 0.0
    %1511 = vmatpush1.msra.mxu0 0.0
    %1512 = vmatprep.subr.mxu0 0.0
    %1513 = vmatpush1.msra.mxu0 0.0
    %1514 = vmatprep.subr.mxu0 0.0
    %1515 = vmatpush1.msra.mxu0 0.0
    %1516 = vmatprep.subr.mxu0 0.0
    %1517 = vmatpush1.msra.mxu0 0.0
    %1518 = vmatprep.subr.mxu0 0.0
    %1519 = vmatpush1.msra.mxu0 0.0
    %1520 = vmatprep.subr.mxu0 0.0
    %1521 = vmatpush1.msra.mxu0 0.0
    %1522 = vmatprep.subr.mxu0 0.0
    %1523 = vmatpush1.msra.mxu0 0.0
    %1524 = vmatprep.subr.mxu0 0.0
    %1525 = vmatpush1.msra.mxu0 0.0
    %1526 = vmatprep.mubr.f32.mxu0 0.0
    %1527 = vmatmul.mubr.f32.gmra.mrb[0].mxu0 %v1388
    %v1528 = vpop.f32.mrb[0].mxu0
    %v1529 = vadd.f32 %v1459, %v1528
    %v1530 = vpop.f32.mrb[0].mxu0
    %1531 = vdwg.mxu0
    %1532 = vst [vmem:[#allocation8] sm:$0x3] %v1529
    // Predicated region
    $region34: #{tpu_custom_call.1} parent=1 // pred_check
      _
    $region35: #{tpu_custom_call.1} parent=1 // pred_check_branch
      %1534 = sbr.rel (0) target = $region37
    $region36: #{tpu_custom_call.1} parent=1 // pred_region
      %s1536 = ssub.s32 32, 32
      %1537 = vsyncadd [#allocation4], %s1536
      %s1539 = sshll.u32 [#allocation8], 4
      %s1540 = int_to_ptr.vmem [resolvable:$true] %s1539
      %1542 = dma.vmem_to_hbm [thread:$0]  %s1540, 32, %s5, [#allocation4]
    $region37: #{tpu_custom_call.1} parent=1 // pred_fallthru
      _
    // Predicated region
    $region38: #{tpu_custom_call.1} parent=1 // pred_check
      _
    $region39: #{tpu_custom_call.1} parent=1 // pred_check_branch
      %1544 = sbr.rel (0) target = $region41
    $region40: #{tpu_custom_call.1} parent=1 // pred_region
      %1545 = dma.done [#allocation4], 32
    $region41: #{tpu_custom_call.1} parent=1 // pred_fallthru
      _
    %1546 = vsyncpa [#allocation3], 1
    %1547 = vsyncpa [#allocation6], 1
    %1548 = vsyncpa [#allocation4], 1

</llo_original>
